<compile_context>
chip_gen: v7x
topology: tpu7x:2x2x1
jax: 0.10.0
libtpu: 0.0.40
codegen_flags: <defaults>
</compile_context>

<pallas_src>
import functools

import jax
import jax.numpy as jnp
from jax.experimental import pallas as pl
from jax.experimental.pallas import tpu as pltpu


def _trans_loss_kernel(th_ref, out_ref, *, bblk, lblk, n, n_pts, s, ctr):
    inv_s = 1.0 / s
    bi = pl.program_id(0)
    lj = pl.program_id(1)

    # Resident composed-theta table; slice this block's rows (sublane-aligned).
    row0 = pl.multiple_of(bi * bblk, 8)
    t = th_ref[pl.ds(row0, bblk), :]                 # (bblk, 8)

    # Generate this lane block's coordinate grid + validity mask in-register.
    lane = jax.lax.broadcasted_iota(jnp.int32, (bblk, lblk), 1)
    idx = lane + lj * lblk                           # flat point index
    idx_f = idx.astype(jnp.float32)
    nf = float(n)
    ci = jnp.floor((idx_f + 0.5) * (1.0 / nf))       # i = idx // n (exact)
    cj = idx_f - ci * nf                             # j = idx %  n
    msk = (idx < n_pts).astype(jnp.float32)          # 1.0 on real points

    # PointsToUnitCoords of the constant pixel grid.
    nx = (ci - ctr) * inv_s
    ny = (cj - ctr) * inv_s

    # Single composed affine (aff_C . aff_B . aff_A); the intermediate
    # unnorm -> norm roundtrips of the original chain are exact identities.
    zx = t[:, 0:1] * nx + t[:, 1:2] * ny + t[:, 2:3]
    zy = t[:, 3:4] * nx + t[:, 4:5] * ny + t[:, 5:6]

    # ||coord - C_coord||^2 per point; pixel diff = s * (unit-coord diff).
    dx = (zx - nx) * s
    dy = (zy - ny) * s
    out_ref[...] = (dx * dx + dy * dy) * msk         # (bblk, lblk) lane-dense


@functools.partial(jax.jit, static_argnames=("num_of_coord", "im_size", "bblk"))
def trans_loss(theta_A, theta_B, theta_C, num_of_coord=16, im_size=240.0,
               bblk=8):
    B = theta_A.shape[0]
    n = int(num_of_coord)
    N = n * n
    lblk = 128
    n_pad = max(lblk, pl.cdiv(N, lblk) * lblk)
    nlane = n_pad // lblk
    b_pad = pl.cdiv(B, bblk) * bblk
    nblocks = b_pad // bblk

    s = (float(im_size) - 1.0) / 2.0
    ctr = 1.0 + s

    # Compose the three 2x3 affines into one per-batch affine (cheap, fused
    # under jit).  P3 = Mc Mb Ma P + (Mc (Mb tA + tB) + tC).
    A = theta_A.reshape(B, 2, 3).astype(jnp.float32)
    Bm = theta_B.reshape(B, 2, 3).astype(jnp.float32)
    C = theta_C.reshape(B, 2, 3).astype(jnp.float32)
    MA, tA = A[:, :, :2], A[:, :, 2]
    MB, tB = Bm[:, :, :2], Bm[:, :, 2]
    MC, tC = C[:, :, :2], C[:, :, 2]
    M = jnp.einsum("bij,bjk->bik", MC, jnp.einsum("bij,bjk->bik", MB, MA))
    t = jnp.einsum("bij,bj->bi", MC,
                   jnp.einsum("bij,bj->bi", MB, tA) + tB) + tC
    th = jnp.concatenate([M, t[:, :, None]], axis=2).reshape(B, 6)
    th = jnp.pad(th, ((0, b_pad - B), (0, 2)))       # (b_pad, 8), resident

    kernel = functools.partial(_trans_loss_kernel, bblk=bblk, lblk=lblk,
                               n=n, n_pts=N, s=s, ctr=ctr)

    out = pl.pallas_call(
        kernel,
        out_shape=jax.ShapeDtypeStruct((b_pad, n_pad), jnp.float32),
        grid_spec=pltpu.PrefetchScalarGridSpec(
            num_scalar_prefetch=0,
            grid=(nblocks, nlane),
            in_specs=[
                # Whole composed-theta table stays resident in VMEM.
                pl.BlockSpec((b_pad, 8), lambda i, j: (0, 0)),
            ],
            out_specs=pl.BlockSpec((bblk, lblk), lambda i, j: (i, j)),
        ),
        compiler_params=pltpu.CompilerParams(
            dimension_semantics=("parallel", "parallel")),
    )(th)

    # Padded batch rows are dropped; padded point lanes are already masked.
    return jnp.sum(out[:B]) / float(N) / float(B)


# ---------------- pure-JAX reference (literal chain, for correctness) -------
def _trans_loss_ref(theta_A, theta_B, theta_C, num_of_coord=16, im_size=240.0):
    B = theta_A.shape[0]
    n = num_of_coord
    N = n * n
    ii = jnp.repeat(jnp.arange(n, dtype=jnp.float32), n)
    jj = jnp.tile(jnp.arange(n, dtype=jnp.float32), n)
    coord = jnp.stack([ii, jj], axis=0)                     # (2, N)
    coord_b = jnp.broadcast_to(coord[None], (B, 2, N))

    s = (float(im_size) - 1.0) / 2.0
    ctr = 1.0 + s
    norm = lambda P: (P - ctr) / s
    unnorm = lambda P: P * s + ctr

    def aff(theta, P):
        return jnp.einsum('bij,bjn->bin', theta[:, :, :2].astype(jnp.float32),
                          P) + theta[:, :, 2:].astype(jnp.float32)

    P = norm(coord_b)
    P = aff(theta_A, P)
    P = norm(unnorm(P))
    P = aff(theta_B, P)
    P = norm(unnorm(P))
    P = aff(theta_C, P)
    c_coord = unnorm(P)
    return jnp.sum((coord_b - c_coord) ** 2) / float(N) / float(B)


if __name__ == "__main__":
    B = 2
    NUM_OF_COORD = 16
    key = jax.random.PRNGKey(0)
    k1, k2, k3 = jax.random.split(key, 3)
    identity = jnp.tile(
        jnp.array([[1.0, 0.0, 0.0], [0.0, 1.0, 0.0]], jnp.float32), (B, 1, 1))
    theta_A = identity + 0.1 * jax.random.normal(k1, (B, 2, 3), jnp.float32)
    theta_B = identity + 0.1 * jax.random.normal(k2, (B, 2, 3), jnp.float32)
    theta_C = identity + 0.1 * jax.random.normal(k3, (B, 2, 3), jnp.float32)

    loss = jax.block_until_ready(
        trans_loss(theta_A, theta_B, theta_C, num_of_coord=NUM_OF_COORD))
    loss_ref = jax.block_until_ready(
        _trans_loss_ref(theta_A, theta_B, theta_C, NUM_OF_COORD))

    assert jnp.isfinite(loss)
    assert abs(float(loss) - float(loss_ref)) <= (
        1e-3 * abs(float(loss_ref)) + 1e-6), (float(loss), float(loss_ref))
    print("KERNEL_OK")
</pallas_src>

<mosaic_0001>
module attributes {stable_mosaic.version = 11 : i64} {
  func.func @_trans_loss_kernel(%arg0: i32, %arg1: i32, %arg2: memref<8x8xf32, #tpu.memory_space<vmem>>, %arg3: memref<8x128xf32, #tpu.memory_space<vmem>>) attributes {dimension_semantics = [#tpu.dimension_semantics<parallel>, #tpu.dimension_semantics<parallel>], iteration_bounds = array<i64: 1, 2>, scalar_prefetch = 0 : i64, scratch_operands = 0 : i64, tpu.core_type = #tpu.core_type<tc>, window_params = [{pipeline_mode = #tpu.pipeline_mode<synchronous>, transform_indices = @transform_0, window_bounds = array<i64: 8, 8>}, {transform_indices = @transform_1, window_bounds = array<i64: 8, 128>}]} {
    %c8_i32 = arith.constant 8 : i32
    %0 = arith.muli %arg0, %c8_i32 : i32
    %1 = tpu.assume_multiple %0, 8 : i32
    %2 = arith.index_cast %1 : i32 to index
    %c0 = arith.constant 0 : index
    %3 = vector.load %arg2[%2, %c0] : memref<8x8xf32, #tpu.memory_space<vmem>>, vector<8x8xf32>
    %4 = tpu.iota {dimensions = array<i32: 1>} : vector<8x128xi32>
    %c128_i32 = arith.constant 128 : i32
    %5 = arith.muli %arg1, %c128_i32 : i32
    %6 = vector.broadcast %5 : i32 to vector<8x128xi32>
    %7 = arith.addi %4, %6 : vector<8x128xi32>
    %8 = arith.sitofp %7 : vector<8x128xi32> to vector<8x128xf32>
    %cst = arith.constant 5.000000e-01 : f32
    %9 = vector.broadcast %cst : f32 to vector<8x128xf32>
    %10 = arith.addf %8, %9 : vector<8x128xf32>
    %cst_0 = arith.constant 6.250000e-02 : f32
    %11 = vector.broadcast %cst_0 : f32 to vector<8x128xf32>
    %12 = arith.mulf %10, %11 : vector<8x128xf32>
    %13 = math.floor %12 : vector<8x128xf32>
    %cst_1 = arith.constant 1.600000e+01 : f32
    %14 = vector.broadcast %cst_1 : f32 to vector<8x128xf32>
    %15 = arith.mulf %13, %14 : vector<8x128xf32>
    %16 = arith.subf %8, %15 : vector<8x128xf32>
    %c256_i32 = arith.constant 256 : i32
    %17 = vector.broadcast %c256_i32 : i32 to vector<8x128xi32>
    %18 = arith.cmpi slt, %7, %17 : vector<8x128xi32>
    %19 = arith.extui %18 : vector<8x128xi1> to vector<8x128xi32>
    %20 = arith.sitofp %19 : vector<8x128xi32> to vector<8x128xf32>
    %cst_2 = arith.constant 1.205000e+02 : f32
    %21 = vector.broadcast %cst_2 : f32 to vector<8x128xf32>
    %22 = arith.subf %13, %21 : vector<8x128xf32>
    %cst_3 = arith.constant 0.00836820062 : f32
    %23 = vector.broadcast %cst_3 : f32 to vector<8x128xf32>
    %24 = arith.mulf %22, %23 : vector<8x128xf32>
    %cst_4 = arith.constant 1.205000e+02 : f32
    %25 = vector.broadcast %cst_4 : f32 to vector<8x128xf32>
    %26 = arith.subf %16, %25 : vector<8x128xf32>
    %cst_5 = arith.constant 0.00836820062 : f32
    %27 = vector.broadcast %cst_5 : f32 to vector<8x128xf32>
    %28 = arith.mulf %26, %27 : vector<8x128xf32>
    %29 = vector.extract_strided_slice %3 {offsets = [0, 0], sizes = [8, 1], strides = [1, 1]} : vector<8x8xf32> to vector<8x1xf32>
    %30 = vector.broadcast %29 : vector<8x1xf32> to vector<8x128xf32>
    %31 = arith.mulf %30, %24 : vector<8x128xf32>
    %32 = vector.extract_strided_slice %3 {offsets = [0, 1], sizes = [8, 1], strides = [1, 1]} : vector<8x8xf32> to vector<8x1xf32>
    %33 = vector.broadcast %32 : vector<8x1xf32> to vector<8x128xf32>
    %34 = arith.mulf %33, %28 : vector<8x128xf32>
    %35 = arith.addf %31, %34 : vector<8x128xf32>
    %36 = vector.extract_strided_slice %3 {offsets = [0, 2], sizes = [8, 1], strides = [1, 1]} : vector<8x8xf32> to vector<8x1xf32>
    %37 = vector.broadcast %36 : vector<8x1xf32> to vector<8x128xf32>
    %38 = arith.addf %35, %37 : vector<8x128xf32>
    %39 = vector.extract_strided_slice %3 {offsets = [0, 3], sizes = [8, 1], strides = [1, 1]} : vector<8x8xf32> to vector<8x1xf32>
    %40 = vector.broadcast %39 : vector<8x1xf32> to vector<8x128xf32>
    %41 = arith.mulf %40, %24 : vector<8x128xf32>
    %42 = vector.extract_strided_slice %3 {offsets = [0, 4], sizes = [8, 1], strides = [1, 1]} : vector<8x8xf32> to vector<8x1xf32>
    %43 = vector.broadcast %42 : vector<8x1xf32> to vector<8x128xf32>
    %44 = arith.mulf %43, %28 : vector<8x128xf32>
    %45 = arith.addf %41, %44 : vector<8x128xf32>
    %46 = vector.extract_strided_slice %3 {offsets = [0, 5], sizes = [8, 1], strides = [1, 1]} : vector<8x8xf32> to vector<8x1xf32>
    %47 = vector.broadcast %46 : vector<8x1xf32> to vector<8x128xf32>
    %48 = arith.addf %45, %47 : vector<8x128xf32>
    %49 = arith.subf %38, %24 : vector<8x128xf32>
    %cst_6 = arith.constant 1.195000e+02 : f32
    %50 = vector.broadcast %cst_6 : f32 to vector<8x128xf32>
    %51 = arith.mulf %49, %50 : vector<8x128xf32>
    %52 = arith.subf %48, %28 : vector<8x128xf32>
    %cst_7 = arith.constant 1.195000e+02 : f32
    %53 = vector.broadcast %cst_7 : f32 to vector<8x128xf32>
    %54 = arith.mulf %52, %53 : vector<8x128xf32>
    %55 = arith.mulf %51, %51 : vector<8x128xf32>
    %56 = arith.mulf %54, %54 : vector<8x128xf32>
    %57 = arith.addf %55, %56 : vector<8x128xf32>
    %58 = arith.mulf %57, %20 : vector<8x128xf32>
    %c0_8 = arith.constant 0 : index
    %c0_9 = arith.constant 0 : index
    %59 = vector.load %arg3[%c0_8, %c0_9] : memref<8x128xf32, #tpu.memory_space<vmem>>, vector<8x128xf32>
    tpu.vector_store %arg3[%c0_8, %c0_9], %58 {strides = array<i32>} : memref<8x128xf32, #tpu.memory_space<vmem>>, vector<8x128xf32>,
    return
  }
  func.func @transform_0(%arg0: i32, %arg1: i32) -> (i32, i32) {
    %c0_i32 = arith.constant 0 : i32
    %c0_i32_0 = arith.constant 0 : i32
    %c0_i32_1 = arith.constant 0 : i32
    return %c0_i32, %c0_i32_0 : i32, i32
  }
  func.func @transform_1(%arg0: i32, %arg1: i32) -> (i32, i32) {
    %c0_i32 = arith.constant 0 : i32
    return %arg0, %arg1 : i32, i32
  }
}

</mosaic_0001>

<llo_original>
// kernel: trans_loss.1
$region0: #{trans_loss.1}
  #allocation0 [shape = 'u32[]', space=smem, size = 0x4, offset = 0x4, fixed_abs, tag = 'smem constant byte address 0x4 - core index']
  #allocation1 [shape = 'u32[144,128]{1,0:T(1,128)}', space=vmem, size = 0x12000, scoped, tag = 'internal scratch']
  %s0 = inlined_call_operand.vmem [shape: f32[8,8], index: 0, kind: input, shape index: {}]
  %s1 = inlined_call_operand.vmem [shape: f32[8,256], index: 1, kind: output, shape index: {}]
  %s2 = sld [smem:[#allocation0]]
  $region37: #{trans_loss.1} parent=0
    _
  %s4 = ssub.s32 1, %s2
  %s5 = scalar_select 0, %s4, %s2
  loop: start=0, step=1, limit=4
  $region2: #{trans_loss.1} parent=0 // loop_pre_header
    _
  $region3: #{trans_loss.1} parent=0 // loop_header
    %s7 = sphi 0, %s11
    %p8 = scmp.ge.s32.totalorder %s7, 4
    %s14 = sphi 0, %s26
    %s15 = sphi 0, %s22
    %s16 = sphi 0, %s14
    %s17 = sphi 0, %s15
    %s18 = sphi 0, %s16
    %s19 = sphi 0, %s17
    %s27 = sphi 0, %s27
    %s29 = sphi 0, %s27
    %s30 = sphi 0, %s29
    %s44 = sphi 0, %s30
    %s52 = sphi 0, %s54
    %s55 = sphi 0, %s52
    %s56 = sphi 0, %s55
    %s72 = sphi 0, %s56
  $region4: #{trans_loss.1} parent=0 // loop_header_branch
    %10 = sbr.rel (%p8) target = $region8
  $region5: #{trans_loss.1} parent=0 // loop_body
    %s12 = ssub.s32 %s7, 1
    %s13 = ssub.s32 %s7, 2
    %s20 = sadd.s32 1, %s15
    %p21 = scmp.ge.s32.totalorder %s20, 2
    %s22 = scalar_select %p21, 0, %s20
    %s23 = sadd.s32 1, %s14
    %s24 = scalar_select %p21, %s23, %s14
    %p25 = scmp.ge.s32.totalorder %s24, 1
    %s26 = scalar_select %p25, 0, %s24
    %s28 = sadd.s32 %s27, 1
    %p31 = scmp.eq.s32.totalorder %s7, 1
    %p32 = scmp.ne.s32.totalorder %s27, %s29
    %p33 = scmp.eq.s32.totalorder %s7, 0
    %p34 = por %p32, %p33
    %p35 = scmp.ne.s32.totalorder %s27, %s29
    %p36 = scmp.eq.s32.totalorder %s12, 1
    %p37 = por %p35, %p36
    %p38 = scmp.ne.s32.totalorder %s29, %s30
    %p39 = scmp.eq.s32.totalorder %s12, 0
    %p40 = por %p38, %p39
    %p41 = scmp.ne.s32.totalorder %s29, %s30
    %p42 = scmp.eq.s32.totalorder %s13, 1
    %p43 = por %p41, %p42
    %p45 = scmp.ne.s32.totalorder %s30, %s44
    %p46 = scmp.eq.s32.totalorder %s13, 0
    %p47 = por %p45, %p46
    %s48 = ssub.s32 %s14, %s26
    %s49 = ssub.s32 %s15, %s22
    %s50 = sor.u32 %s48, %s49
    %p51 = scmp.eq.s32.totalorder %s50, 0
    %s53 = sadd.s32 %s52, 1
    %s54 = scalar_select %p51, %s52, %s53
    %p57 = pneg %p51
    %p58 = scmp.eq.s32.totalorder %s7, 1
    %p59 = por %p57, %p58
    %p60 = scmp.ne.s32.totalorder %s52, %s55
    %p61 = scmp.eq.s32.totalorder %s7, 0
    %p62 = por %p60, %p61
    %p63 = scmp.ne.s32.totalorder %s52, %s55
    %p64 = scmp.eq.s32.totalorder %s12, 1
    %p65 = por %p63, %p64
    %p66 = scmp.ne.s32.totalorder %s55, %s56
    %p67 = scmp.eq.s32.totalorder %s12, 0
    %p68 = por %p66, %p67
    %p69 = scmp.ne.s32.totalorder %s55, %s56
    %p70 = scmp.eq.s32.totalorder %s13, 1
    %p71 = por %p69, %p70
    %p73 = scmp.ne.s32.totalorder %s56, %s72
    %p74 = scmp.eq.s32.totalorder %s13, 0
    %p75 = por %p73, %p74
    %p76 = scmp.le.s32.totalorder 1, %s7
    %p77 = scmp.lt.s32.totalorder %s7, 3
    %p78 = pnand %p76, %p77
    %p79 = pneg %p78
    // Predicated region
    $region9: #{trans_loss.1} parent=5 // pred_check
      _
    $region10: #{trans_loss.1} parent=5 // pred_check_branch
      %81 = sbr.rel (%p78) target = $region12
    $region11: #{trans_loss.1} parent=5 // pred_region
      %s82 = ssub.s32 %s7, 1
      // Predicated region
      $region13: #{trans_loss.1} parent=11 // pred_check
        %p83 = pneg %p40
      $region14: #{trans_loss.1} parent=11 // pred_check_branch
        %85 = sbr.rel (%p83) target = $region16
      $region15: #{trans_loss.1} parent=11 // pred_region
        _
      $region16: #{trans_loss.1} parent=11 // pred_fallthru
        _
    $region12: #{trans_loss.1} parent=5 // pred_fallthru
      _
    %p86 = scmp.lt.s32.totalorder %s7, 2
    // Predicated region
    $region17: #{trans_loss.1} parent=5 // pred_check
      %p87 = pneg %p86
    $region18: #{trans_loss.1} parent=5 // pred_check_branch
      %89 = sbr.rel (%p87) target = $region20
    $region19: #{trans_loss.1} parent=5 // pred_region
      _
    $region20: #{trans_loss.1} parent=5 // pred_fallthru
      _
    %p90 = scmp.le.s32.totalorder 1, %s7
    %p91 = scmp.lt.s32.totalorder %s7, 3
    %p92 = pnand %p90, %p91
    %p93 = pneg %p92
    // Predicated region
    $region21: #{trans_loss.1} parent=5 // pred_check
      _
    $region22: #{trans_loss.1} parent=5 // pred_check_branch
      %95 = sbr.rel (%p92) target = $region24
    $region23: #{trans_loss.1} parent=5 // pred_region
      %s96 = ssub.s32 %s7, 1
      %p97 = pneg %p40
      %p98 = pneg %p37
      %p99 = pneg %p68
      %p100 = pneg %p65
      %p101 = scmp.lt.s32.totalorder %s16, 0
      %s102 = scalar_select %p101, %s16, 0
      %p103 = scmp.lt.s32.totalorder %s17, 1
      %s104 = scalar_select %p103, %s17, 1
      %s105 = smul.addr %s102, 2
      %s106 = sadd.s32 %s104, %s105
      %s107 = smul.addr %s106, 8
      %s108 = scalar_lea.vmem %s1, %s107
      %p109 = scmp.lt.s32.totalorder %s16, 0
      %s110 = scalar_select %p109, %s16, 0
      %p111 = scmp.lt.s32.totalorder %s17, 1
      %s112 = scalar_select %p111, %s17, 1
      %s113 = smul.addr %s110, 2
      %s114 = sadd.s32 %s112, %s113
      %s115 = smul.addr %s114, 8
      %s116 = scalar_lea.vmem %s1, %s115
      %s117 = smul.u32 %s16, 8
      %s118 = scalar_lea.vmem %s0, %s117
      %v119 = vld [vmem:[%s118] sm:$0xff]
      %v120 = vlaneseq
      %v121 = vand.u32 %v120, 127
      %s122 = smul.u32 %s17, 128
      %v123 = vstv %s122
      %v124 = vadd.s32 %v121, %v123
      %v125 = vcvt.s32.f32 %v124
      %v126 = vadd.f32 %v125, 0.5
      %v127 = vmul.f32 %v126, 0.0625
      %v128 = vfloor.f32 %v127
      %v129 = vmul.f32 %v128, 16.0
      %v130 = vsub.f32 %v125, %v129
      %vm131 = vcmp.lt.s32.totalorder %v124, 256
      %v132 = vsel %vm131, 1, 0
      %v133 = vcvt.s32.f32 %v132
      %v134 = vsub.f32 %v128, 120.5
      %v135 = vmul.f32 %v134, 0.008368201
      %v136 = vsub.f32 %v130, 120.5
      %v137 = vmul.f32 %v136, 0.008368201
      %139 = vset.pattern.permute.xlu0 0
      %140 = vperm.xlu0 %139, %v119
      %v141 = vpop.permute.xlu0 %140
      %v143 = vmul.f32 %v141, %v135
      %144 = vset.pattern.permute.xlu0 1
      %145 = vperm.xlu0 %144, %v119
      %v146 = vpop.permute.xlu0 %145
      %v148 = vmul.f32 %v146, %v137
      %v149 = vadd.f32 %v143, %v148
      %150 = vset.pattern.permute.xlu0 2
      %151 = vperm.xlu0 %150, %v119
      %v152 = vpop.permute.xlu0 %151
      %v154 = vadd.f32 %v149, %v152
      %155 = vset.pattern.permute.xlu0 3
      %156 = vperm.xlu0 %155, %v119
      %v157 = vpop.permute.xlu0 %156
      %v159 = vmul.f32 %v157, %v135
      %160 = vset.pattern.permute.xlu0 4
      %161 = vperm.xlu0 %160, %v119
      %v162 = vpop.permute.xlu0 %161
      %v164 = vmul.f32 %v162, %v137
      %v165 = vadd.f32 %v159, %v164
      %166 = vset.pattern.permute.xlu0 5
      %167 = vperm.xlu0 %166, %v119
      %v168 = vpop.permute.xlu0 %167
      %v170 = vadd.f32 %v165, %v168
      %v171 = vsub.f32 %v154, %v135
      %v172 = vmul.f32 %v171, 119.5
      %v173 = vsub.f32 %v170, %v137
      %v174 = vmul.f32 %v173, 119.5
      %v175 = vmul.f32 %v172, %v172
      %v176 = vmul.f32 %v174, %v174
      %v177 = vadd.f32 %v175, %v176
      %v178 = vmul.f32 %v177, %v133
      %179 = vst [vmem:[%s116] sm:$0xff] %v178
      %p180 = scmp.lt.s32.totalorder %s16, 0
      %s181 = scalar_select %p180, %s16, 0
      %p182 = scmp.lt.s32.totalorder %s17, 1
      %s183 = scalar_select %p182, %s17, 1
      %s184 = smul.addr %s181, 2
      %s185 = sadd.s32 %s183, %s184
      %s186 = smul.addr %s185, 8
      %s187 = scalar_lea.vmem %s1, %s186
      // Predicated region
      $region25: #{trans_loss.1} parent=23 // pred_check
        %p188 = pneg %p65
      $region26: #{trans_loss.1} parent=23 // pred_check_branch
        %190 = sbr.rel (%p188) target = $region28
      $region27: #{trans_loss.1} parent=23 // pred_region
        _
      $region28: #{trans_loss.1} parent=23 // pred_fallthru
        _
    $region24: #{trans_loss.1} parent=5 // pred_fallthru
      _
    %p191 = scmp.le.s32.totalorder 2, %s7
    // Predicated region
    $region29: #{trans_loss.1} parent=5 // pred_check
      %p192 = pneg %p191
    $region30: #{trans_loss.1} parent=5 // pred_check_branch
      %194 = sbr.rel (%p192) target = $region32
    $region31: #{trans_loss.1} parent=5 // pred_region
      %s195 = ssub.s32 %s7, 2
      // Predicated region
      $region33: #{trans_loss.1} parent=31 // pred_check
        %p196 = pneg %p71
      $region34: #{trans_loss.1} parent=31 // pred_check_branch
        %198 = sbr.rel (%p196) target = $region36
      $region35: #{trans_loss.1} parent=31 // pred_region
        %p199 = scmp.lt.s32.totalorder %s18, 0
        %s200 = scalar_select %p199, %s18, 0
        %p201 = scmp.lt.s32.totalorder %s19, 1
        %s202 = scalar_select %p201, %s19, 1
        %s203 = smul.addr %s200, 2
        %s204 = sadd.s32 %s202, %s203
        %s205 = smul.addr %s204, 8
        %s206 = scalar_lea.vmem %s1, %s205
      $region36: #{trans_loss.1} parent=31 // pred_fallthru
        _
    $region32: #{trans_loss.1} parent=5 // pred_fallthru
      _
  $region6: #{trans_loss.1} parent=0 // loop_footer
    %s11 = sadd.s32 1, %s7
  $region7: #{trans_loss.1} parent=0 // loop_footer_branch
    %6 = sbr.rel target = $region3
  $region8: #{trans_loss.1} parent=0 // loop_exit
    _

</llo_original>
